<compile_context>
chip_gen: v7x
topology: tpu7x:2x2x1
jax: 0.10.0
libtpu: 0.0.40
codegen_flags: <defaults>
</compile_context>

<pallas_src>
import math
import functools

import jax
import jax.numpy as jnp
from jax.experimental import pallas as pl
from jax.experimental.pallas import tpu as pltpu


def _round_up(n, m):
    return ((n + m - 1) // m) * m


def _mha_kernel(x_ref, bias_ref, w_in_ref, w_o_ref, hmask_ref, hl_ref, o_ref,
                *, num_heads, head_dim, mxu_dtype):
    # Block shapes (one grid step handles a batch block of BB rows):
    #   x_ref    : (BB, S, Din)        concatenated [queries | keys | values]
    #   bias_ref : (BB, 1, S*H)        additive mask bias in m = k*H + h layout
    #   w_in_ref : (Din, 3*NH)         block-diag [Wq*scale | Wk | Wv] (mxu_dtype)
    #   w_o_ref  : (NH, NP)            W_o zero-padded to NP = round_up(NH, 128)
    #   hmask_ref: (H, NH)             hmask[h, n] = 1 iff n // head_dim == h
    #   hl_ref   : (S*H, NH)           hl[m, n]   = 1 iff m %  H == n // head_dim
    #   o_ref    : (BB, S, NP)
    BB, S, Din = x_ref.shape
    NH = num_heads * head_dim
    M = S * num_heads
    NP = o_ref.shape[-1]
    f32 = jnp.float32

    def mx(a):  # cast only when needed (default mxu_dtype=f32 -> no casts)
        return a if a.dtype == mxu_dtype else a.astype(mxu_dtype)

    # ---- Fused QKV projection: ONE MXU matmul for the whole batch block.
    x2 = mx(x_ref[...].reshape(BB * S, Din))
    proj = jnp.dot(x2, w_in_ref[...], preferred_element_type=f32)     # (BB*S, 3NH)
    qp2 = proj[:, :NH]
    kp2 = proj[:, NH:2 * NH]
    vp2 = proj[:, 2 * NH:3 * NH]

    # ---- Masked head expansion (replaces per-head stack/concat/transpose):
    # row m = k*H + h of k_exp / v_exp holds the head-h lanes of position k.
    hmask = hmask_ref[...]                                            # (H, NH)
    k_exp = (mx(kp2)[:, None, :] * hmask[None, :, :]).reshape(BB, M, NH)
    v_exp = (mx(vp2)[:, None, :] * hmask[None, :, :]).reshape(BB, M, NH)
    qp = mx(qp2).reshape(BB, S, NH)

    # ---- Scores for ALL heads/keys in one leading-batch contraction.
    # scores[b, q, k*H+h] = (q_h . k_h) / sqrt(dh)   (scale folded into W_q)
    scores = jnp.einsum('bqn,bmn->bqm', qp, k_exp,
                        preferred_element_type=f32)                   # (BB, S, M)
    scores = scores + bias_ref[...]                                   # (BB, 1, M)

    # Shared per-(b, q) shift: softmax is shift-invariant within each head and
    # every exponent stays <= 0.  (Exact per-head max would only matter if the
    # inter-head score spread exceeded ~85, far outside this module's regime.)
    m_ = jnp.max(scores, axis=-1, keepdims=True)
    e = jnp.exp(scores - m_)                                          # (BB, S, M) f32
    # TODO(synk): dropout on the attention weights is identity (inference).

    # ---- Unnormalized context + per-head softmax denominators.
    # v_exp is zero outside head-h lanes, so this already yields the
    # head-concatenated context (transpose_output is free).
    ctx_un = jnp.einsum('bqm,bmn->bqn', mx(e), v_exp,
                        preferred_element_type=f32)                   # (BB, S, NH)
    l_nh = jnp.dot(mx(e.reshape(BB * S, M)), hl_ref[...],
                   preferred_element_type=f32).reshape(BB, S, NH)     # sum_k e per head
    l_nh = jnp.maximum(l_nh, 1e-30)                                   # avoid 0*inf
    ctx = ctx_un * pl.reciprocal(l_nh, approx=True)                   # EUP, divide-free

    # ---- Output projection into a lane-dense (multiple-of-128) slab.
    out = jnp.dot(mx(ctx.reshape(BB * S, NH)), w_o_ref[...],
                  preferred_element_type=f32)                         # (BB*S, NP)
    o_ref[...] = out.reshape(BB, S, NP).astype(o_ref.dtype)


def multi_head_attention2(queries, keys, values, mask_num, columns,
                          wq_t, wk_t, wv_t, wo_t, num_heads,
                          *, batch_block=None, mxu_dtype=jnp.float32):
    """Pallas forward of MultiHeadAttention2.

    queries: (B, Sq, Dq), keys: (B, Sk, Dk), values: (B, Sk, Dv)
    mask_num: (B,) int labels; columns: (Sk,) int labels of key positions
    wq_t/wk_t/wv_t: (D_in, NH) = torch Linear.weight.T ; wo_t: (NH, NH)
    mxu_dtype: operand dtype for MXU matmuls (accumulation is always f32).
    """
    B, Sq, Dq = queries.shape
    _, Sk, Dk = keys.shape
    _, _, Dv = values.shape
    NH = wq_t.shape[1]
    head_dim = NH // num_heads
    assert head_dim * num_heads == NH
    H = num_heads
    f32 = jnp.float32

    # ---- Pad q/k/v to a common sequence length so they share one input slab.
    S = max(Sq, Sk)

    def pad_seq(a):
        a = a.astype(f32)
        return a if a.shape[1] == S else jnp.pad(a, ((0, 0), (0, S - a.shape[1]), (0, 0)))

    x = jnp.concatenate([pad_seq(queries), pad_seq(keys), pad_seq(values)], axis=-1)
    Din = Dq + Dk + Dv

    # ---- Fused block-diagonal input projection (1/sqrt(dh) folded into W_q).
    scale = 1.0 / math.sqrt(head_dim)
    w_in = jnp.zeros((Din, 3 * NH), f32)
    w_in = w_in.at[:Dq, :NH].set(wq_t.astype(f32) * scale)
    w_in = w_in.at[Dq:Dq + Dk, NH:2 * NH].set(wk_t.astype(f32))
    w_in = w_in.at[Dq + Dk:, 2 * NH:].set(wv_t.astype(f32))

    # ---- W_o zero-padded to a lane-dense output width (unmasked stores/DMA).
    NP = _round_up(NH, 128)
    wo_p = jnp.pad(wo_t.astype(f32), ((0, 0), (0, NP - NH)))

    # ---- Mask -> additive bias in m = k*H + h layout (padded keys masked too).
    # exp(score - 1e6) underflows to 0 in f32, matching "scores[mask] = -1e6".
    bias_k = jnp.where(mask_num[:, None] == columns[None, :], -1e6, 0.0).astype(f32)
    if S > Sk:
        bias_k = jnp.concatenate([bias_k, jnp.full((B, S - Sk), -1e6, f32)], axis=1)
    bias_m = jnp.repeat(bias_k, H, axis=1).reshape(B, 1, S * H)

    # ---- Head-selection constants (grid-invariant, fetched once).
    lane_head = jnp.arange(NH, dtype=jnp.int32) // head_dim
    hmask = (lane_head[None, :] == jnp.arange(H, dtype=jnp.int32)[:, None]).astype(f32)
    hl = jnp.tile(hmask, (S, 1))                                      # (S*H, NH)

    # Weights / constants pre-cast once in the wrapper (no in-kernel casts).
    w_in = w_in.astype(mxu_dtype)
    wo_p = wo_p.astype(mxu_dtype)
    hmask = hmask.astype(mxu_dtype)
    hl = hl.astype(mxu_dtype)

    # ---- Block / grid selection: >=2 steps when B>=2 (v7x megacore +
    # DMA/compute pipelining), ~512 rows per block otherwise, VMEM-guarded.
    if batch_block is None:
        batch_block = max(1, 512 // max(S, 1))
    bb = max(1, min(batch_block, B))
    if B >= 2:
        bb = max(1, min(bb, pl.cdiv(B, 2)))
    # Crude guard: expanded-head temporaries (k_exp/v_exp/scores/e ...) scale
    # as bb*S*H*NH; keep them well under the scoped VMEM default.  For long
    # sequences this kernel should be re-tiled with an online-softmax loop.
    per_b_bytes = S * H * max(NH, NP) * 4 * 8
    bb = max(1, min(bb, (16 << 20) // max(per_b_bytes, 1)))
    grid = (pl.cdiv(B, bb),)

    kernel = functools.partial(_mha_kernel, num_heads=H, head_dim=head_dim,
                               mxu_dtype=mxu_dtype)

    grid_spec = pltpu.PrefetchScalarGridSpec(
        num_scalar_prefetch=0,
        grid=grid,
        in_specs=[
            pl.BlockSpec((bb, S, Din), lambda b: (b, 0, 0)),
            pl.BlockSpec((bb, 1, S * H), lambda b: (b, 0, 0)),
            pl.BlockSpec((Din, 3 * NH), lambda b: (0, 0)),
            pl.BlockSpec((NH, NP), lambda b: (0, 0)),
            pl.BlockSpec((H, NH), lambda b: (0, 0)),
            pl.BlockSpec((S * H, NH), lambda b: (0, 0)),
        ],
        out_specs=pl.BlockSpec((bb, S, NP), lambda b: (b, 0, 0)),
    )

    out = pl.pallas_call(
        kernel,
        grid_spec=grid_spec,
        out_shape=jax.ShapeDtypeStruct((B, S, NP), queries.dtype),
        compiler_params=pltpu.CompilerParams(
            dimension_semantics=("parallel",)),
    )(x, bias_m, w_in, wo_p, hmask, hl)

    # Drop the padded query rows / padded output lanes.
    return out[:, :Sq, :NH]


def _reference(queries, keys, values, mask_num, columns,
               wq_t, wk_t, wv_t, wo_t, num_heads):
    """Pure-JAX reference mirroring the PyTorch module (dropout = identity)."""
    B, Sq, _ = queries.shape
    _, Sk, _ = keys.shape
    NH = wq_t.shape[1]
    dh = NH // num_heads

    def heads(x):  # transpose_qkv
        x = x.reshape(B, -1, num_heads, dh).transpose(0, 2, 1, 3)
        return x.reshape(B * num_heads, -1, dh)

    q = heads(jnp.einsum('bsd,dh->bsh', queries, wq_t, precision='highest'))
    k = heads(jnp.einsum('bsd,dh->bsh', keys, wk_t, precision='highest'))
    v = heads(jnp.einsum('bsd,dh->bsh', values, wv_t, precision='highest'))

    scores = jnp.einsum('bqd,bkd->bqk', q, k, precision='highest') / math.sqrt(dh)
    mask = (mask_num[:, None] == columns[None, :])            # (B, Sk)
    mask = jnp.repeat(mask, num_heads, axis=0)[:, None, :]    # (B*H, 1, Sk)
    scores = jnp.where(mask, -1000000.0, scores)
    attn = jax.nn.softmax(scores, axis=-1)
    out = jnp.einsum('bqk,bkd->bqd', attn, v, precision='highest')
    # transpose_output
    out = out.reshape(B, num_heads, Sq, dh).transpose(0, 2, 1, 3).reshape(B, Sq, NH)
    return jnp.einsum('bsh,ho->bso', out, wo_t, precision='highest')


if __name__ == "__main__":
    # Small shapes consistent with the module's forward.
    B, Sq, Sk = 2, 8, 8
    query_size = key_size = value_size = 16
    num_hiddens, num_heads = 32, 4

    key = jax.random.PRNGKey(0)
    ks = jax.random.split(key, 8)
    queries = jax.random.normal(ks[0], (B, Sq, query_size), jnp.float32)
    keys_in = jax.random.normal(ks[1], (B, Sk, key_size), jnp.float32)
    values = jax.random.normal(ks[2], (B, Sk, value_size), jnp.float32)

    # Deterministic parameter init (torch Linear weight is (out, in); we pass W^T).
    wq_t = 0.1 * jax.random.normal(ks[3], (query_size, num_hiddens), jnp.float32)
    wk_t = 0.1 * jax.random.normal(ks[4], (key_size, num_hiddens), jnp.float32)
    wv_t = 0.1 * jax.random.normal(ks[5], (value_size, num_hiddens), jnp.float32)
    wo_t = 0.1 * jax.random.normal(ks[6], (num_hiddens, num_hiddens), jnp.float32)

    # Key-position labels ("columns") and per-batch masked label.
    columns = jnp.arange(Sk, dtype=jnp.int32)
    mask_num = jnp.array([3, 5], dtype=jnp.int32)

    ref = _reference(queries, keys_in, values, mask_num, columns,
                     wq_t, wk_t, wv_t, wo_t, num_heads)

    # Default f32 MXU-operand path (best for these tiny shapes, v5e-safe).
    out_f32 = multi_head_attention2(queries, keys_in, values, mask_num, columns,
                                    wq_t, wk_t, wv_t, wo_t, num_heads)
    out_f32 = jax.block_until_ready(out_f32)
    assert out_f32.shape == (B, Sq, num_hiddens)
    assert jnp.allclose(out_f32, ref, atol=1e-2, rtol=1e-2)

    # Optional bf16-operand MXU path (f32 accumulation throughout).
    out_bf16 = multi_head_attention2(queries, keys_in, values, mask_num, columns,
                                     wq_t, wk_t, wv_t, wo_t, num_heads,
                                     mxu_dtype=jnp.bfloat16)
    out_bf16 = jax.block_until_ready(out_bf16)
    assert out_bf16.shape == (B, Sq, num_hiddens)
    assert jnp.allclose(out_bf16, ref, atol=2e-2, rtol=2e-2)

    print("KERNEL_OK")
</pallas_src>

<mosaic_0001>
module attributes {stable_mosaic.version = 11 : i64} {
  func.func @_mha_kernel(%arg0: i32, %arg1: memref<1x8x48xf32, #tpu.memory_space<vmem>>, %arg2: memref<1x1x32xf32, #tpu.memory_space<vmem>>, %arg3: memref<48x96xf32, #tpu.memory_space<vmem>>, %arg4: memref<32x128xf32, #tpu.memory_space<vmem>>, %arg5: memref<4x32xf32, #tpu.memory_space<vmem>>, %arg6: memref<32x32xf32, #tpu.memory_space<vmem>>, %arg7: memref<1x8x128xf32, #tpu.memory_space<vmem>>) attributes {dimension_semantics = [#tpu.dimension_semantics<parallel>], iteration_bounds = array<i64: 2>, scalar_prefetch = 0 : i64, scratch_operands = 0 : i64, tpu.core_type = #tpu.core_type<tc>, window_params = [{transform_indices = @transform_0, window_bounds = array<i64: 1, 8, 48>}, {transform_indices = @transform_1, window_bounds = array<i64: 1, 1, 32>}, {pipeline_mode = #tpu.pipeline_mode<synchronous>, transform_indices = @transform_2, window_bounds = array<i64: 48, 96>}, {pipeline_mode = #tpu.pipeline_mode<synchronous>, transform_indices = @transform_3, window_bounds = array<i64: 32, 128>}, {pipeline_mode = #tpu.pipeline_mode<synchronous>, transform_indices = @transform_4, window_bounds = array<i64: 4, 32>}, {pipeline_mode = #tpu.pipeline_mode<synchronous>, transform_indices = @transform_5, window_bounds = array<i64: 32, 32>}, {transform_indices = @transform_6, window_bounds = array<i64: 1, 8, 128>}]} {
    %c0 = arith.constant 0 : index
    %c0_0 = arith.constant 0 : index
    %c0_1 = arith.constant 0 : index
    %0 = vector.load %arg1[%c0, %c0_0, %c0_1] : memref<1x8x48xf32, #tpu.memory_space<vmem>>, vector<1x8x48xf32>
    %1 = vector.shape_cast %0 : vector<1x8x48xf32> to vector<8x48xf32>
    %c0_2 = arith.constant 0 : index
    %c0_3 = arith.constant 0 : index
    %2 = vector.load %arg3[%c0_2, %c0_3] : memref<48x96xf32, #tpu.memory_space<vmem>>, vector<48x96xf32>
    %cst = arith.constant dense<0.000000e+00> : vector<8x96xf32>
    %3 = tpu.matmul %1, %2, %cst {dimension_numbers = #tpu.dot_dimension_numbers<[1], [0], [0], [1], [0, 0, 1, 1], [], []>} : vector<8x48xf32>, vector<48x96xf32>, vector<8x96xf32> -> vector<8x96xf32>
    %4 = vector.extract_strided_slice %3 {offsets = [0, 0], sizes = [8, 32], strides = [1, 1]} : vector<8x96xf32> to vector<8x32xf32>
    %5 = vector.extract_strided_slice %3 {offsets = [0, 32], sizes = [8, 32], strides = [1, 1]} : vector<8x96xf32> to vector<8x32xf32>
    %6 = vector.extract_strided_slice %3 {offsets = [0, 64], sizes = [8, 32], strides = [1, 1]} : vector<8x96xf32> to vector<8x32xf32>
    %c0_4 = arith.constant 0 : index
    %c0_5 = arith.constant 0 : index
    %7 = vector.load %arg5[%c0_4, %c0_5] : memref<4x32xf32, #tpu.memory_space<vmem>>, vector<4x32xf32>
    %8 = vector.shape_cast %5 : vector<8x32xf32> to vector<8x1x32xf32>
    %9 = vector.shape_cast %7 : vector<4x32xf32> to vector<1x4x32xf32>
    %10 = vector.broadcast %8 : vector<8x1x32xf32> to vector<8x4x32xf32>
    %11 = vector.broadcast %9 : vector<1x4x32xf32> to vector<8x4x32xf32>
    %12 = arith.mulf %10, %11 : vector<8x4x32xf32>
    %13 = vector.shape_cast %12 : vector<8x4x32xf32> to vector<1x32x32xf32>
    %14 = vector.shape_cast %6 : vector<8x32xf32> to vector<8x1x32xf32>
    %15 = vector.shape_cast %7 : vector<4x32xf32> to vector<1x4x32xf32>
    %16 = vector.broadcast %14 : vector<8x1x32xf32> to vector<8x4x32xf32>
    %17 = vector.broadcast %15 : vector<1x4x32xf32> to vector<8x4x32xf32>
    %18 = arith.mulf %16, %17 : vector<8x4x32xf32>
    %19 = vector.shape_cast %18 : vector<8x4x32xf32> to vector<1x32x32xf32>
    %20 = vector.shape_cast %4 : vector<8x32xf32> to vector<1x8x32xf32>
    "tpu.trace_start"() <{level = 10 : i32, message = "bqn,bmn->bqm"}> : () -> ()
    %cst_6 = arith.constant dense<0.000000e+00> : vector<1x8x32xf32>
    %21 = tpu.matmul %20, %13, %cst_6 {dimension_numbers = #tpu.dot_dimension_numbers<[2], [2], [1], [1], [0, 0, 0, 1, 1, 1], [0], [0]>} : vector<1x8x32xf32>, vector<1x32x32xf32>, vector<1x8x32xf32> -> vector<1x8x32xf32>
    "tpu.trace_stop"() : () -> ()
    %c0_7 = arith.constant 0 : index
    %c0_8 = arith.constant 0 : index
    %c0_9 = arith.constant 0 : index
    %22 = vector.load %arg2[%c0_7, %c0_8, %c0_9] : memref<1x1x32xf32, #tpu.memory_space<vmem>>, vector<1x1x32xf32>
    %23 = vector.broadcast %22 : vector<1x1x32xf32> to vector<1x8x32xf32>
    %24 = arith.addf %21, %23 : vector<1x8x32xf32>
    %cst_10 = arith.constant dense<0xFF800000> : vector<1x8xf32>
    %25 = vector.multi_reduction <maximumf>, %24, %cst_10 [2] : vector<1x8x32xf32> to vector<1x8xf32>
    %26 = vector.shape_cast %25 : vector<1x8xf32> to vector<1x8x1xf32>
    %27 = vector.broadcast %26 : vector<1x8x1xf32> to vector<1x8x32xf32>
    %28 = arith.subf %24, %27 : vector<1x8x32xf32>
    %29 = math.exp %28 : vector<1x8x32xf32>
    "tpu.trace_start"() <{level = 10 : i32, message = "bqm,bmn->bqn"}> : () -> ()
    %cst_11 = arith.constant dense<0.000000e+00> : vector<1x8x32xf32>
    %30 = tpu.matmul %29, %19, %cst_11 {dimension_numbers = #tpu.dot_dimension_numbers<[2], [1], [1], [2], [0, 0, 0, 1, 1, 2], [0], [0]>} : vector<1x8x32xf32>, vector<1x32x32xf32>, vector<1x8x32xf32> -> vector<1x8x32xf32>
    "tpu.trace_stop"() : () -> ()
    %31 = vector.shape_cast %29 : vector<1x8x32xf32> to vector<8x32xf32>
    %c0_12 = arith.constant 0 : index
    %c0_13 = arith.constant 0 : index
    %32 = vector.load %arg6[%c0_12, %c0_13] : memref<32x32xf32, #tpu.memory_space<vmem>>, vector<32x32xf32>
    %cst_14 = arith.constant dense<0.000000e+00> : vector<8x32xf32>
    %33 = tpu.matmul %31, %32, %cst_14 {dimension_numbers = #tpu.dot_dimension_numbers<[1], [0], [0], [1], [0, 0, 1, 1], [], []>} : vector<8x32xf32>, vector<32x32xf32>, vector<8x32xf32> -> vector<8x32xf32>
    %34 = vector.shape_cast %33 : vector<8x32xf32> to vector<1x8x32xf32>
    %cst_15 = arith.constant 1.000000e-30 : f32
    %35 = vector.broadcast %cst_15 : f32 to vector<1x8x32xf32>
    %36 = arith.maximumf %34, %35 : vector<1x8x32xf32>
    %37 = tpu.reciprocal %36 {approx = true} : vector<1x8x32xf32> -> vector<1x8x32xf32>
    %38 = arith.mulf %30, %37 : vector<1x8x32xf32>
    %39 = vector.shape_cast %38 : vector<1x8x32xf32> to vector<8x32xf32>
    %c0_16 = arith.constant 0 : index
    %c0_17 = arith.constant 0 : index
    %40 = vector.load %arg4[%c0_16, %c0_17] : memref<32x128xf32, #tpu.memory_space<vmem>>, vector<32x128xf32>
    %cst_18 = arith.constant dense<0.000000e+00> : vector<8x128xf32>
    %41 = tpu.matmul %39, %40, %cst_18 {dimension_numbers = #tpu.dot_dimension_numbers<[1], [0], [0], [1], [0, 0, 1, 1], [], []>} : vector<8x32xf32>, vector<32x128xf32>, vector<8x128xf32> -> vector<8x128xf32>
    %42 = vector.shape_cast %41 : vector<8x128xf32> to vector<1x8x128xf32>
    %c0_19 = arith.constant 0 : index
    %c0_20 = arith.constant 0 : index
    %c0_21 = arith.constant 0 : index
    %43 = vector.load %arg7[%c0_19, %c0_20, %c0_21] : memref<1x8x128xf32, #tpu.memory_space<vmem>>, vector<1x8x128xf32>
    tpu.vector_store %arg7[%c0_19, %c0_20, %c0_21], %42 {strides = array<i32>} : memref<1x8x128xf32, #tpu.memory_space<vmem>>, vector<1x8x128xf32>,
    return
  }
  func.func @transform_0(%arg0: i32) -> (i32, i32, i32) {
    %c0_i32 = arith.constant 0 : i32
    %c0_i32_0 = arith.constant 0 : i32
    %c0_i32_1 = arith.constant 0 : i32
    return %arg0, %c0_i32, %c0_i32_0 : i32, i32, i32
  }
  func.func @transform_1(%arg0: i32) -> (i32, i32, i32) {
    %c0_i32 = arith.constant 0 : i32
    %c0_i32_0 = arith.constant 0 : i32
    %c0_i32_1 = arith.constant 0 : i32
    return %arg0, %c0_i32, %c0_i32_0 : i32, i32, i32
  }
  func.func @transform_2(%arg0: i32) -> (i32, i32) {
    %c0_i32 = arith.constant 0 : i32
    %c0_i32_0 = arith.constant 0 : i32
    %c0_i32_1 = arith.constant 0 : i32
    return %c0_i32, %c0_i32_0 : i32, i32
  }
  func.func @transform_3(%arg0: i32) -> (i32, i32) {
    %c0_i32 = arith.constant 0 : i32
    %c0_i32_0 = arith.constant 0 : i32
    %c0_i32_1 = arith.constant 0 : i32
    return %c0_i32, %c0_i32_0 : i32, i32
  }
  func.func @transform_4(%arg0: i32) -> (i32, i32) {
    %c0_i32 = arith.constant 0 : i32
    %c0_i32_0 = arith.constant 0 : i32
    %c0_i32_1 = arith.constant 0 : i32
    return %c0_i32, %c0_i32_0 : i32, i32
  }
  func.func @transform_5(%arg0: i32) -> (i32, i32) {
    %c0_i32 = arith.constant 0 : i32
    %c0_i32_0 = arith.constant 0 : i32
    %c0_i32_1 = arith.constant 0 : i32
    return %c0_i32, %c0_i32_0 : i32, i32
  }
  func.func @transform_6(%arg0: i32) -> (i32, i32, i32) {
    %c0_i32 = arith.constant 0 : i32
    %c0_i32_0 = arith.constant 0 : i32
    %c0_i32_1 = arith.constant 0 : i32
    return %arg0, %c0_i32, %c0_i32_0 : i32, i32, i32
  }
}

</mosaic_0001>

<llo_original>
// kernel: tpu_custom_call.1
$region0: #{tpu_custom_call.1}
  #allocation0 [shape = 'u32[]', space=smem, size = 0x4, offset = 0x4, fixed_abs, tag = 'smem constant byte address 0x4 - core index']
  #allocation1 [shape = 'u32[144,128]{1,0:T(1,128)}', space=vmem, size = 0x12000, scoped, tag = 'internal scratch']
  %s0 = inlined_call_operand.hbm [shape: f32[2,8,48], index: 0, kind: input, shape index: {}]
  %s1 = inlined_call_operand.vmem [shape: f32[2,1,32], index: 1, kind: input, shape index: {}]
  %s2 = inlined_call_operand.hbm [shape: f32[48,96], index: 2, kind: input, shape index: {}]
  %s3 = inlined_call_operand.hbm [shape: f32[32,128], index: 3, kind: input, shape index: {}]
  %s4 = inlined_call_operand.vmem [shape: f32[4,32], index: 4, kind: input, shape index: {}]
  %s5 = inlined_call_operand.hbm [shape: f32[32,32], index: 5, kind: input, shape index: {}]
  %s6 = inlined_call_operand.hbm [shape: f32[2,8,128], index: 6, kind: output, shape index: {}]
  %s7 = sld [smem:[#allocation0]]
  $region73: #{tpu_custom_call.1} parent=0
    _
  %s9 = ssub.s32 1, %s7
  %s10 = scalar_select 0, %s9, %s7
  $region1: #{tpu_custom_call.1} parent=0
    #allocation2 [shape = 'u8[8192]{0}', space=vmem, size = 0x2000, scoped, tag = 'input window, operand 0']
    #allocation3 [shape = 's32[2]{0}', space=sflag, size = 0x8, scoped, tag = 'scoped memory for tpu_custom_call.1']
    #allocation4 [shape = 's32[2]{0}', space=sflag, size = 0x8, scoped, tag = 'scoped memory for tpu_custom_call.1']
    #allocation5 [shape = 'u8[24576]{0}', space=vmem, size = 0x6000, scoped, tag = 'input window, operand 2, single buffered']
    #allocation6 [shape = 's32[1]{0}', space=sflag, size = 0x4, scoped, tag = 'scoped memory for tpu_custom_call.1']
    #allocation7 [shape = 'u8[16384]{0}', space=vmem, size = 0x4000, scoped, tag = 'input window, operand 3, single buffered']
    #allocation8 [shape = 'u8[16384]{0}', space=vmem, size = 0x4000, scoped, tag = 'input window, operand 5, single buffered']
    #allocation9 [shape = 's32[1]{0}', space=sflag, size = 0x4, scoped, tag = 'scoped memory for tpu_custom_call.1']
    #allocation10 [shape = 'u8[8192]{0}', space=vmem, size = 0x2000, scoped, tag = 'output window, operand 0']
    %11 = vsyncpa [#allocation3], 0
    %s12 = scalar_lea.sflag [#allocation3], 1
    %13 = vsyncpa %s12, 0
    %14 = vsyncpa [#allocation6], 0
    %15 = vsyncpa [#allocation9], 0
    %16 = vsyncpa [#allocation4], 0
    %s17 = scalar_lea.sflag [#allocation4], 1
    %18 = vsyncpa %s17, 0
    loop: start=0, step=1, limit=4
    $region2: #{tpu_custom_call.1} parent=1 // loop_pre_header
      _
    $region3: #{tpu_custom_call.1} parent=1 // loop_header
      %s20 = sphi 0, %s24
      %p21 = scmp.ge.s32.totalorder %s20, 4
      %s30 = sphi 0, %s32
      %s33 = sphi 0, %s30
      %s34 = sphi 0, %s33
      %s50 = sphi 0, %s34
      %s56 = sphi 0, %s58
      %s59 = sphi 0, %s56
      %s60 = sphi 0, %s59
      %s76 = sphi 0, %s60
      %s80 = sphi 0, %s80
      %s82 = sphi 0, %s80
      %s83 = sphi 0, %s82
      %s97 = sphi 0, %s83
      %s101 = sphi 0, %s101
      %s103 = sphi 0, %s101
      %s104 = sphi 0, %s103
      %s118 = sphi 0, %s104
      %s122 = sphi 0, %s122
      %s124 = sphi 0, %s122
      %s125 = sphi 0, %s124
      %s139 = sphi 0, %s125
      %s143 = sphi 0, %s143
      %s145 = sphi 0, %s143
      %s146 = sphi 0, %s145
      %s160 = sphi 0, %s146
      %s166 = sphi 0, %s168
      %s169 = sphi 0, %s166
      %s170 = sphi 0, %s169
      %s186 = sphi 0, %s170
    $region4: #{tpu_custom_call.1} parent=1 // loop_header_branch
      %23 = sbr.rel (%p21) target = $region8
    $region5: #{tpu_custom_call.1} parent=1 // loop_body
      %s25 = ssub.s32 %s20, 1
      %s26 = ssub.s32 %s20, 2
      %s27 = sadd.s32 %s20, 1
      %s28 = ssub.s32 %s20, %s27
      %p29 = scmp.eq.s32.totalorder %s28, 0
      %s31 = sadd.s32 %s30, 1
      %s32 = scalar_select %p29, %s30, %s31
      %p35 = pneg %p29
      %p36 = scmp.eq.s32.totalorder %s20, 1
      %p37 = por %p35, %p36
      %p38 = scmp.ne.s32.totalorder %s30, %s33
      %p39 = scmp.eq.s32.totalorder %s20, 0
      %p40 = por %p38, %p39
      %p41 = scmp.ne.s32.totalorder %s30, %s33
      %p42 = scmp.eq.s32.totalorder %s25, 1
      %p43 = por %p41, %p42
      %p44 = scmp.ne.s32.totalorder %s33, %s34
      %p45 = scmp.eq.s32.totalorder %s25, 0
      %p46 = por %p44, %p45
      %p47 = scmp.ne.s32.totalorder %s33, %s34
      %p48 = scmp.eq.s32.totalorder %s26, 1
      %p49 = por %p47, %p48
      %p51 = scmp.ne.s32.totalorder %s34, %s50
      %p52 = scmp.eq.s32.totalorder %s26, 0
      %p53 = por %p51, %p52
      %s54 = ssub.s32 %s20, %s27
      %p55 = scmp.eq.s32.totalorder %s54, 0
      %s57 = sadd.s32 %s56, 1
      %s58 = scalar_select %p55, %s56, %s57
      %p61 = pneg %p55
      %p62 = scmp.eq.s32.totalorder %s20, 1
      %p63 = por %p61, %p62
      %p64 = scmp.ne.s32.totalorder %s56, %s59
      %p65 = scmp.eq.s32.totalorder %s20, 0
      %p66 = por %p64, %p65
      %p67 = scmp.ne.s32.totalorder %s56, %s59
      %p68 = scmp.eq.s32.totalorder %s25, 1
      %p69 = por %p67, %p68
      %p70 = scmp.ne.s32.totalorder %s59, %s60
      %p71 = scmp.eq.s32.totalorder %s25, 0
      %p72 = por %p70, %p71
      %p73 = scmp.ne.s32.totalorder %s59, %s60
      %p74 = scmp.eq.s32.totalorder %s26, 1
      %p75 = por %p73, %p74
      %p77 = scmp.ne.s32.totalorder %s60, %s76
      %p78 = scmp.eq.s32.totalorder %s26, 0
      %p79 = por %p77, %p78
      %s81 = sadd.s32 %s80, 1
      %p84 = scmp.eq.s32.totalorder %s20, 1
      %p85 = scmp.ne.s32.totalorder %s80, %s82
      %p86 = scmp.eq.s32.totalorder %s20, 0
      %p87 = por %p85, %p86
      %p88 = scmp.ne.s32.totalorder %s80, %s82
      %p89 = scmp.eq.s32.totalorder %s25, 1
      %p90 = por %p88, %p89
      %p91 = scmp.ne.s32.totalorder %s82, %s83
      %p92 = scmp.eq.s32.totalorder %s25, 0
      %p93 = por %p91, %p92
      %p94 = scmp.ne.s32.totalorder %s82, %s83
      %p95 = scmp.eq.s32.totalorder %s26, 1
      %p96 = por %p94, %p95
      %p98 = scmp.ne.s32.totalorder %s83, %s97
      %p99 = scmp.eq.s32.totalorder %s26, 0
      %p100 = por %p98, %p99
      %s102 = sadd.s32 %s101, 1
      %p105 = scmp.eq.s32.totalorder %s20, 1
      %p106 = scmp.ne.s32.totalorder %s101, %s103
      %p107 = scmp.eq.s32.totalorder %s20, 0
      %p108 = por %p106, %p107
      %p109 = scmp.ne.s32.totalorder %s101, %s103
      %p110 = scmp.eq.s32.totalorder %s25, 1
      %p111 = por %p109, %p110
      %p112 = scmp.ne.s32.totalorder %s103, %s104
      %p113 = scmp.eq.s32.totalorder %s25, 0
      %p114 = por %p112, %p113
      %p115 = scmp.ne.s32.totalorder %s103, %s104
      %p116 = scmp.eq.s32.totalorder %s26, 1
      %p117 = por %p115, %p116
      %p119 = scmp.ne.s32.totalorder %s104, %s118
      %p120 = scmp.eq.s32.totalorder %s26, 0
      %p121 = por %p119, %p120
      %s123 = sadd.s32 %s122, 1
      %p126 = scmp.eq.s32.totalorder %s20, 1
      %p127 = scmp.ne.s32.totalorder %s122, %s124
      %p128 = scmp.eq.s32.totalorder %s20, 0
      %p129 = por %p127, %p128
      %p130 = scmp.ne.s32.totalorder %s122, %s124
      %p131 = scmp.eq.s32.totalorder %s25, 1
      %p132 = por %p130, %p131
      %p133 = scmp.ne.s32.totalorder %s124, %s125
      %p134 = scmp.eq.s32.totalorder %s25, 0
      %p135 = por %p133, %p134
      %p136 = scmp.ne.s32.totalorder %s124, %s125
      %p137 = scmp.eq.s32.totalorder %s26, 1
      %p138 = por %p136, %p137
      %p140 = scmp.ne.s32.totalorder %s125, %s139
      %p141 = scmp.eq.s32.totalorder %s26, 0
      %p142 = por %p140, %p141
      %s144 = sadd.s32 %s143, 1
      %p147 = scmp.eq.s32.totalorder %s20, 1
      %p148 = scmp.ne.s32.totalorder %s143, %s145
      %p149 = scmp.eq.s32.totalorder %s20, 0
      %p150 = por %p148, %p149
      %p151 = scmp.ne.s32.totalorder %s143, %s145
      %p152 = scmp.eq.s32.totalorder %s25, 1
      %p153 = por %p151, %p152
      %p154 = scmp.ne.s32.totalorder %s145, %s146
      %p155 = scmp.eq.s32.totalorder %s25, 0
      %p156 = por %p154, %p155
      %p157 = scmp.ne.s32.totalorder %s145, %s146
      %p158 = scmp.eq.s32.totalorder %s26, 1
      %p159 = por %p157, %p158
      %p161 = scmp.ne.s32.totalorder %s146, %s160
      %p162 = scmp.eq.s32.totalorder %s26, 0
      %p163 = por %p161, %p162
      %s164 = ssub.s32 %s20, %s27
      %p165 = scmp.eq.s32.totalorder %s164, 0
      %s167 = sadd.s32 %s166, 1
      %s168 = scalar_select %p165, %s166, %s167
      %p171 = pneg %p165
      %p172 = scmp.eq.s32.totalorder %s20, 1
      %p173 = por %p171, %p172
      %p174 = scmp.ne.s32.totalorder %s166, %s169
      %p175 = scmp.eq.s32.totalorder %s20, 0
      %p176 = por %p174, %p175
      %p177 = scmp.ne.s32.totalorder %s166, %s169
      %p178 = scmp.eq.s32.totalorder %s25, 1
      %p179 = por %p177, %p178
      %p180 = scmp.ne.s32.totalorder %s169, %s170
      %p181 = scmp.eq.s32.totalorder %s25, 0
      %p182 = por %p180, %p181
      %p183 = scmp.ne.s32.totalorder %s169, %s170
      %p184 = scmp.eq.s32.totalorder %s26, 1
      %p185 = por %p183, %p184
      %p187 = scmp.ne.s32.totalorder %s170, %s186
      %p188 = scmp.eq.s32.totalorder %s26, 0
      %p189 = por %p187, %p188
      %p190 = scmp.le.s32.totalorder 1, %s20
      %p191 = scmp.lt.s32.totalorder %s20, 3
      %p192 = pnand %p190, %p191
      %p193 = pneg %p192
      // Predicated region
      $region9: #{tpu_custom_call.1} parent=5 // pred_check
        _
      $region10: #{tpu_custom_call.1} parent=5 // pred_check_branch
        %195 = sbr.rel (%p192) target = $region12
      $region11: #{tpu_custom_call.1} parent=5 // pred_region
        %s196 = ssub.s32 %s20, 1
        // Predicated region
        $region13: #{tpu_custom_call.1} parent=11 // pred_check
          %p197 = pneg %p93
        $region14: #{tpu_custom_call.1} parent=11 // pred_check_branch
          %199 = sbr.rel (%p197) target = $region16
        $region15: #{tpu_custom_call.1} parent=11 // pred_region
          %s201 = ssub.s32 768, 768
          %202 = vsyncadd [#allocation6], %s201
          %s203 = sshll.u32 [#allocation5], 4
          %s204 = int_to_ptr.vmem [resolvable:$true] %s203
          %209 = dma.hbm_to_vmem [thread:$0]  %s2, 768, %s204, [#allocation6], 128, 128, 8
        $region16: #{tpu_custom_call.1} parent=11 // pred_fallthru
          _
        // Predicated region
        $region17: #{tpu_custom_call.1} parent=11 // pred_check
          %p210 = pneg %p114
        $region18: #{tpu_custom_call.1} parent=11 // pred_check_branch
          %212 = sbr.rel (%p210) target = $region20
        $region19: #{tpu_custom_call.1} parent=11 // pred_region
          %s214 = ssub.s32 512, 512
          %215 = vsyncadd [#allocation6], %s214
          %s216 = sshll.u32 [#allocation7], 4
          %s217 = int_to_ptr.vmem [resolvable:$true] %s216
          %222 = dma.hbm_to_vmem [thread:$0]  %s3, 512, %s217, [#allocation6], 128, 128, 8
        $region20: #{tpu_custom_call.1} parent=11 // pred_fallthru
          _
        // Predicated region
        $region21: #{tpu_custom_call.1} parent=11 // pred_check
          %p223 = pneg %p135
        $region22: #{tpu_custom_call.1} parent=11 // pred_check_branch
          %225 = sbr.rel (%p223) target = $region24
        $region23: #{tpu_custom_call.1} parent=11 // pred_region
          _
        $region24: #{tpu_custom_call.1} parent=11 // pred_fallthru
          _
        // Predicated region
        $region25: #{tpu_custom_call.1} parent=11 // pred_check
          %p226 = pneg %p156
        $region26: #{tpu_custom_call.1} parent=11 // pred_check_branch
          %228 = sbr.rel (%p226) target = $region28
        $region27: #{tpu_custom_call.1} parent=11 // pred_region
          %s230 = ssub.s32 512, 512
          %231 = vsyncadd [#allocation9], %s230
          %s232 = sshll.u32 [#allocation8], 4
          %s233 = int_to_ptr.vmem [resolvable:$true] %s232
          %238 = dma.hbm_to_vmem [thread:$0]  %s5, 512, %s233, [#allocation9], 128, 128, 8
        $region28: #{tpu_custom_call.1} parent=11 // pred_fallthru
          _
      $region12: #{tpu_custom_call.1} parent=5 // pred_fallthru
        _
      %p239 = scmp.lt.s32.totalorder %s20, 2
      // Predicated region
      $region29: #{tpu_custom_call.1} parent=5 // pred_check
        %p240 = pneg %p239
      $region30: #{tpu_custom_call.1} parent=5 // pred_check_branch
        %242 = sbr.rel (%p240) target = $region32
      $region31: #{tpu_custom_call.1} parent=5 // pred_region
        // Predicated region
        $region33: #{tpu_custom_call.1} parent=31 // pred_check
          %p243 = pneg %p40
        $region34: #{tpu_custom_call.1} parent=31 // pred_check_branch
          %245 = sbr.rel (%p243) target = $region36
        $region35: #{tpu_custom_call.1} parent=31 // pred_region
          %s246 = sand.u32 %s30, 1
          %s247 = scalar_lea.sflag [#allocation3], %s246
          %s248 = sand.u32 %s30, 1
          %s249 = smul.addr %s248, 8
          %s250 = scalar_lea.vmem [#allocation2], %s249
          %s252 = ssub.s32 128, 128
          %253 = vsyncadd %s247, %s252
          %s254 = smul.addr %s20, 128
          %s255 = scalar_lea.hbm %s0, %s254
          %s257 = sshll.u32 %s250, 4
          %s258 = int_to_ptr.vmem [resolvable:$true] %s257
          %260 = dma.hbm_to_vmem [thread:$0]  %s255, 128, %s258, %s247
        $region36: #{tpu_custom_call.1} parent=31 // pred_fallthru
          _
        // Predicated region
        $region37: #{tpu_custom_call.1} parent=31 // pred_check
          %p261 = pneg %p66
        $region38: #{tpu_custom_call.1} parent=31 // pred_check_branch
          %263 = sbr.rel (%p261) target = $region40
        $region39: #{tpu_custom_call.1} parent=31 // pred_region
          %p264 = scmp.lt.s32.totalorder %s20, 1
          %s265 = scalar_select %p264, %s20, 1
          %s266 = scalar_lea.vmem %s1, %s265
        $region40: #{tpu_custom_call.1} parent=31 // pred_fallthru
          _
      $region32: #{tpu_custom_call.1} parent=5 // pred_fallthru
        _
      %p267 = scmp.le.s32.totalorder 1, %s20
      %p268 = scmp.lt.s32.totalorder %s20, 3
      %p269 = pnand %p267, %p268
      %p270 = pneg %p269
      // Predicated region
      $region41: #{tpu_custom_call.1} parent=5 // pred_check
        _
      $region42: #{tpu_custom_call.1} parent=5 // pred_check_branch
        %272 = sbr.rel (%p269) target = $region44
      $region43: #{tpu_custom_call.1} parent=5 // pred_region
        %s273 = ssub.s32 %s20, 1
        %s274 = sand.u32 %s33, 1
        %s275 = scalar_lea.sflag [#allocation3], %s274
        %s276 = sand.u32 %s33, 1
        %s277 = smul.addr %s276, 8
        %s278 = scalar_lea.vmem [#allocation2], %s277
        // Predicated region
        $region45: #{tpu_custom_call.1} parent=43 // pred_check
          %p279 = pneg %p46
        $region46: #{tpu_custom_call.1} parent=43 // pred_check_branch
          %281 = sbr.rel (%p279) target = $region48
        $region47: #{tpu_custom_call.1} parent=43 // pred_region
          %282 = dma.done %s275, 128
        $region48: #{tpu_custom_call.1} parent=43 // pred_fallthru
          _
        // Predicated region
        $region49: #{tpu_custom_call.1} parent=43 // pred_check
          %p283 = pneg %p93
        $region50: #{tpu_custom_call.1} parent=43 // pred_check_branch
          %285 = sbr.rel (%p283) target = $region52
        $region51: #{tpu_custom_call.1} parent=43 // pred_region
          %286 = dma.done [#allocation6], 768
        $region52: #{tpu_custom_call.1} parent=43 // pred_fallthru
          _
        // Predicated region
        $region53: #{tpu_custom_call.1} parent=43 // pred_check
          %p287 = pneg %p114
        $region54: #{tpu_custom_call.1} parent=43 // pred_check_branch
          %289 = sbr.rel (%p287) target = $region56
        $region55: #{tpu_custom_call.1} parent=43 // pred_region
          %290 = dma.done [#allocation6], 512
        $region56: #{tpu_custom_call.1} parent=43 // pred_fallthru
          _
        // Predicated region
        $region57: #{tpu_custom_call.1} parent=43 // pred_check
          %p291 = pneg %p156
        $region58: #{tpu_custom_call.1} parent=43 // pred_check_branch
          %293 = sbr.rel (%p291) target = $region60
        $region59: #{tpu_custom_call.1} parent=43 // pred_region
          %294 = dma.done [#allocation9], 512
        $region60: #{tpu_custom_call.1} parent=43 // pred_fallthru
          _
        %s295 = sand.u32 %s33, 1
        %s296 = scalar_lea.sflag [#allocation3], %s295
        %s297 = sand.u32 %s33, 1
        %s298 = smul.addr %s297, 8
        %s299 = scalar_lea.vmem [#allocation2], %s298
        %p300 = pneg %p46
        %p301 = pneg %p43
        %p302 = scmp.lt.s32.totalorder %s25, 1
        %s303 = scalar_select %p302, %s25, 1
        %s304 = scalar_lea.vmem %s1, %s303
        %p305 = pneg %p72
        %p306 = pneg %p69
        %p307 = pneg %p93
        %p308 = pneg %p90
        %p309 = pneg %p114
        %p310 = pneg %p111
        %p311 = pneg %p135
        %p312 = pneg %p132
        %p313 = pneg %p156
        %p314 = pneg %p153
        %p315 = pneg %p182
        %p316 = pneg %p179
        %s317 = sand.u32 %s169, 1
        %s318 = scalar_lea.sflag [#allocation4], %s317
        %s319 = sand.u32 %s169, 1
        %s320 = smul.addr %s319, 8
        %s321 = scalar_lea.vmem [#allocation10], %s320
        %p322 = scmp.lt.s32.totalorder %s25, 1
        %s323 = scalar_select %p322, %s25, 1
        %s324 = scalar_lea.vmem %s1, %s323
        %v325 = vld [vmem:[%s278] sm:$0xff]
        %v326 = vld [vmem:[#allocation5] sm:$0xff]
        %v327 = vld [vmem:[#allocation5 + $0x8] sm:$0xff]
        %v328 = vld [vmem:[#allocation5 + $0x10] sm:$0xff]
        %v329 = vld [vmem:[#allocation5 + $0x18] sm:$0xff]
        %v330 = vld [vmem:[#allocation5 + $0x20] sm:$0xff]
        %v331 = vld [vmem:[#allocation5 + $0x28] sm:$0xff]
        %vm332 = vcmask 392192
        %v334 = vsel %vm332, %v325, 0
        %336 = vmatprep.subr.mxu0 0.0
        %337 = vmatpush1.msra.mxu0 %v326
        %338 = vmatprep.subr.mxu0 0.0
        %339 = vmatpush1.msra.mxu0 %v327
        %340 = vmatprep.subr.mxu0 0.0
        %341 = vmatpush1.msra.mxu0 %v328
        %342 = vmatprep.subr.mxu0 0.0
        %343 = vmatpush1.msra.mxu0 %v329
        %344 = vmatprep.subr.mxu0 0.0
        %345 = vmatpush1.msra.mxu0 %v330
        %346 = vmatprep.subr.mxu0 0.0
        %347 = vmatpush1.msra.mxu0 %v331
        %348 = vmatprep.subr.mxu0 0.0
        %349 = vmatpush1.msra.mxu0 0.0
        %350 = vmatprep.subr.mxu0 0.0
        %351 = vmatpush1.msra.mxu0 0.0
        %352 = vmatprep.subr.mxu0 0.0
        %353 = vmatpush1.msra.mxu0 0.0
        %354 = vmatprep.subr.mxu0 0.0
        %355 = vmatpush1.msra.mxu0 0.0
        %356 = vmatprep.subr.mxu0 0.0
        %357 = vmatpush1.msra.mxu0 0.0
        %358 = vmatprep.subr.mxu0 0.0
        %359 = vmatpush1.msra.mxu0 0.0
        %360 = vmatprep.subr.mxu0 0.0
        %361 = vmatpush1.msra.mxu0 0.0
        %362 = vmatprep.subr.mxu0 0.0
        %363 = vmatpush1.msra.mxu0 0.0
        %364 = vmatprep.subr.mxu0 0.0
        %365 = vmatpush1.msra.mxu0 0.0
        %366 = vmatprep.subr.mxu0 0.0
        %367 = vmatpush1.msra.mxu0 0.0
        %368 = vmatprep.subr.mxu0 0.0
        %369 = vmatpush1.msra.mxu0 0.0
        %370 = vmatprep.subr.mxu0 0.0
        %371 = vmatpush1.msra.mxu0 0.0
        %372 = vmatprep.subr.mxu0 0.0
        %373 = vmatpush1.msra.mxu0 0.0
        %374 = vmatprep.subr.mxu0 0.0
        %375 = vmatpush1.msra.mxu0 0.0
        %376 = vmatprep.subr.mxu0 0.0
        %377 = vmatpush1.msra.mxu0 0.0
        %378 = vmatprep.subr.mxu0 0.0
        %379 = vmatpush1.msra.mxu0 0.0
        %380 = vmatprep.subr.mxu0 0.0
        %381 = vmatpush1.msra.mxu0 0.0
        %382 = vmatprep.subr.mxu0 0.0
        %383 = vmatpush1.msra.mxu0 0.0
        %384 = vmatprep.subr.mxu0 0.0
        %385 = vmatpush1.msra.mxu0 0.0
        %386 = vmatprep.subr.mxu0 0.0
        %387 = vmatpush1.msra.mxu0 0.0
        %388 = vmatprep.subr.mxu0 0.0
        %389 = vmatpush1.msra.mxu0 0.0
        %390 = vmatprep.subr.mxu0 0.0
        %391 = vmatpush1.msra.mxu0 0.0
        %392 = vmatprep.subr.mxu0 0.0
        %393 = vmatpush1.msra.mxu0 0.0
        %394 = vmatprep.subr.mxu0 0.0
        %395 = vmatpush1.msra.mxu0 0.0
        %396 = vmatprep.subr.mxu0 0.0
        %397 = vmatpush1.msra.mxu0 0.0
        %398 = vmatprep.subr.mxu0 0.0
        %399 = vmatpush1.msra.mxu0 0.0
        %400 = vmatprep.mubr.f32.mxu0 0.0
        %401 = vmatmul.mubr.f32.gmra.mrb[0].mxu0 %v334
        %v402 = vpop.f32.mrb[0].mxu0
        %v403 = vadd.f32 0.0, %v402
        %v404 = vpop.f32.mrb[0].mxu0
        %405 = vdwg.mxu0
        %v406 = vld [vmem:[%s4] sm:$0xf]
        %v408 = vcombine.high %v403, %v403
        %v410 = vunpack.c.l.s4 1966171168
        %v411 = vunpack.c.0.s8 %v410
        %v412 = vlaneseq
        %v413 = vshrl.u32 %v412, 7
        %v414 = vsub.s32 %v411, %v413
        %v415 = vrot.slane %v403, %v414
        %v417 = vunpack.c.l.s4 1966171168
        %v418 = vunpack.c.0.s8 %v417
        %v419 = vlaneseq
        %v420 = vshrl.u32 %v419, 7
        %v421 = vsub.s32 %v418, %v420
        %v422 = vrot.slane %v408, %v421
        %v423 = vcombine.high %v415, %v415
        %v424 = vcombine.high %v422, %v422
        %v426 = vunpack.c.l.s4 1966171168
        %v427 = vunpack.c.0.s8 %v426
        %v428 = vlaneseq
        %v429 = vshrl.u32 %v428, 7
        %v430 = vsub.s32 %v427, %v429
        %v431 = vrot.slane %v415, %v430
        %v433 = vunpack.c.l.s4 1966171168
        %v434 = vunpack.c.0.s8 %v433
        %v435 = vlaneseq
        %v436 = vshrl.u32 %v435, 7
        %v437 = vsub.s32 %v434, %v436
        %v438 = vrot.slane %v422, %v437
        %v440 = vunpack.c.l.s4 1966171168
        %v441 = vunpack.c.0.s8 %v440
        %v442 = vlaneseq
        %v443 = vshrl.u32 %v442, 7
        %v444 = vsub.s32 %v441, %v443
        %v445 = vrot.slane %v423, %v444
        %v447 = vunpack.c.l.s4 1966171168
        %v448 = vunpack.c.0.s8 %v447
        %v449 = vlaneseq
        %v450 = vshrl.u32 %v449, 7
        %v451 = vsub.s32 %v448, %v450
        %v452 = vrot.slane %v424, %v451
        %v453 = vcombine.high %v431, %v431
        %v454 = vcombine.high %v438, %v438
        %v455 = vcombine.high %v445, %v445
        %v456 = vcombine.high %v452, %v452
        %v457 = vlaneseq
        %v458 = vshrl.u32 %v457, 7
        %v459 = vsub.s32 0, %v458
        %v460 = vrot.slane %v431, %v459
        %v461 = vlaneseq
        %v462 = vshrl.u32 %v461, 7
        %v463 = vsub.s32 0, %v462
        %v464 = vrot.slane %v445, %v463
        %v465 = vlaneseq
        %v466 = vshrl.u32 %v465, 7
        %v467 = vsub.s32 0, %v466
        %v468 = vrot.slane %v453, %v467
        %v469 = vlaneseq
        %v470 = vshrl.u32 %v469, 7
        %v471 = vsub.s32 0, %v470
        %v472 = vrot.slane %v455, %v471
        %v473 = vlaneseq
        %v474 = vshrl.u32 %v473, 7
        %v475 = vsub.s32 0, %v474
        %v476 = vrot.slane %v438, %v475
        %v477 = vlaneseq
        %v478 = vshrl.u32 %v477, 7
        %v479 = vsub.s32 0, %v478
        %v480 = vrot.slane %v452, %v479
        %v481 = vlaneseq
        %v482 = vshrl.u32 %v481, 7
        %v483 = vsub.s32 0, %v482
        %v484 = vrot.slane %v454, %v483
        %v485 = vlaneseq
        %v486 = vshrl.u32 %v485, 7
        %v487 = vsub.s32 0, %v486
        %v488 = vrot.slane %v456, %v487
        %498 = vrot.lane.b32.xlu0 %v406, 32
        %v499 = vpop.permute.xlu0 %498
        %v501 = vmul.f32 %v460, %v499
        %v502 = vmul.f32 %v464, %v499
        %v503 = vmul.f32 %v468, %v499
        %v504 = vmul.f32 %v472, %v499
        %v505 = vmul.f32 %v476, %v499
        %v506 = vmul.f32 %v480, %v499
        %v507 = vmul.f32 %v484, %v499
        %v508 = vmul.f32 %v488, %v499
        %509 = vrot.lane.b32.xlu0 %v406, 64
        %v510 = vpop.permute.xlu0 %509
        %v512 = vmul.f32 %v460, %v510
        %v513 = vmul.f32 %v464, %v510
        %v514 = vmul.f32 %v468, %v510
        %v515 = vmul.f32 %v472, %v510
        %v516 = vmul.f32 %v476, %v510
        %v517 = vmul.f32 %v480, %v510
        %v518 = vmul.f32 %v484, %v510
        %v519 = vmul.f32 %v488, %v510
        %v520 = vld [vmem:[%s324] sm:$0x1]
        %v522 = vlaneseq
        %v523 = vshrl.u32 %v522, 7
        %v524 = vsub.s32 0, %v523
        %v525 = vrot.slane %v520, %v524
        %v535 = vcombine.low %v501, %v502
        %v536 = vcombine.low %v503, %v504
        %v537 = vcombine.low %v505, %v506
        %v538 = vcombine.low %v507, %v508
        %539 = vrot.lane.b32.xlu0 %v535, 96
        %v540 = vpop.permute.xlu0 %539
        %541 = vrot.lane.b32.xlu0 %v536, 96
        %v542 = vpop.permute.xlu0 %541
        %543 = vrot.lane.b32.xlu0 %v537, 96
        %v544 = vpop.permute.xlu0 %543
        %545 = vrot.lane.b32.xlu0 %v538, 96
        %v546 = vpop.permute.xlu0 %545
        %vm547 = vcmask 261120
        %v548 = vsel %vm547, %v403, 0
        %v550 = vsel %vm547, %v540, 0
        %v552 = vsel %vm547, %v542, 0
        %v554 = vsel %vm547, %v544, 0
        %v556 = vsel %vm547, %v546, 0
        %558 = vmatprep.subr.mxu0 0.0
        %559 = vmatpush1.xpose.msra.mxu0 %v550
        %560 = vmatprep.subr.mxu0 0.0
        %561 = vmatpush1.xpose.msra.mxu0 %v552
        %562 = vmatprep.subr.mxu0 0.0
        %563 = vmatpush1.xpose.msra.mxu0 %v554
        %564 = vmatprep.subr.mxu0 0.0
        %565 = vmatpush1.xpose.msra.mxu0 %v556
        %566 = vmatprep.subr.mxu0 0.0
        %567 = vmatpush1.xpose.msra.mxu0 0.0
        %568 = vmatprep.subr.mxu0 0.0
        %569 = vmatpush1.xpose.msra.mxu0 0.0
        %570 = vmatprep.subr.mxu0 0.0
        %571 = vmatpush1.xpose.msra.mxu0 0.0
        %572 = vmatprep.subr.mxu0 0.0
        %573 = vmatpush1.xpose.msra.mxu0 0.0
        %574 = vmatprep.subr.mxu0 0.0
        %575 = vmatpush1.xpose.msra.mxu0 0.0
        %576 = vmatprep.subr.mxu0 0.0
        %577 = vmatpush1.xpose.msra.mxu0 0.0
        %578 = vmatprep.subr.mxu0 0.0
        %579 = vmatpush1.xpose.msra.mxu0 0.0
        %580 = vmatprep.subr.mxu0 0.0
        %581 = vmatpush1.xpose.msra.mxu0 0.0
        %582 = vmatprep.subr.mxu0 0.0
        %583 = vmatpush1.xpose.msra.mxu0 0.0
        %584 = vmatprep.subr.mxu0 0.0
        %585 = vmatpush1.xpose.msra.mxu0 0.0
        %586 = vmatprep.subr.mxu0 0.0
        %587 = vmatpush1.xpose.msra.mxu0 0.0
        %588 = vmatprep.subr.mxu0 0.0
        %589 = vmatpush1.xpose.msra.mxu0 0.0
        %590 = vmatprep.subr.mxu0 0.0
        %591 = vmatpush1.xpose.msra.mxu0 0.0
        %592 = vmatprep.subr.mxu0 0.0
        %593 = vmatpush1.xpose.msra.mxu0 0.0
        %594 = vmatprep.subr.mxu0 0.0
        %595 = vmatpush1.xpose.msra.mxu0 0.0
        %596 = vmatprep.subr.mxu0 0.0
        %597 = vmatpush1.xpose.msra.mxu0 0.0
        %598 = vmatprep.subr.mxu0 0.0
        %599 = vmatpush1.xpose.msra.mxu0 0.0
        %600 = vmatprep.subr.mxu0 0.0
        %601 = vmatpush1.xpose.msra.mxu0 0.0
        %602 = vmatprep.subr.mxu0 0.0
        %603 = vmatpush1.xpose.msra.mxu0 0.0
        %604 = vmatprep.subr.mxu0 0.0
        %605 = vmatpush1.xpose.msra.mxu0 0.0
        %606 = vmatprep.subr.mxu0 0.0
        %607 = vmatpush1.xpose.msra.mxu0 0.0
        %608 = vmatprep.subr.mxu0 0.0
        %609 = vmatpush1.xpose.msra.mxu0 0.0
        %610 = vmatprep.subr.mxu0 0.0
        %611 = vmatpush1.xpose.msra.mxu0 0.0
        %612 = vmatprep.subr.mxu0 0.0
        %613 = vmatpush1.xpose.msra.mxu0 0.0
        %614 = vmatprep.subr.mxu0 0.0
        %615 = vmatpush1.xpose.msra.mxu0 0.0
        %616 = vmatprep.subr.mxu0 0.0
        %617 = vmatpush1.xpose.msra.mxu0 0.0
        %618 = vmatprep.subr.mxu0 0.0
        %619 = vmatpush1.xpose.msra.mxu0 0.0
        %620 = vmatprep.subr.mxu0 0.0
        %621 = vmatpush1.xpose.msra.mxu0 0.0
        %622 = vmatprep.mubr.f32.mxu0 0.0
        %623 = vmatmul.mubr.f32.gmra.mrb[0].mxu0 %v548
        %v624 = vpop.f32.mrb[0].mxu0
        %v625 = vadd.f32 %v525, %v624
        %v626 = vpop.f32.mrb[0].mxu0
        %627 = vdwg.mxu0
        %v628 = vsel %vm547, %v625, -inf
        %629 = vmax.xlane.f32.xlu0 %v628
        %v630 = vpop.xlane.xlu0 %629
        %v631 = vsub.f32 %v625, %v630
        %v632 = vmul.f32 %v631, 1.442695
        %v633 = vpow.pop %v632
        %v642 = vcombine.low %v512, %v513
        %v643 = vcombine.low %v514, %v515
        %v644 = vcombine.low %v516, %v517
        %v645 = vcombine.low %v518, %v519
        %646 = vrot.lane.b32.xlu0 %v642, 64
        %v647 = vpop.permute.xlu0 %646
        %648 = vrot.lane.b32.xlu0 %v643, 64
        %v649 = vpop.permute.xlu0 %648
        %650 = vrot.lane.b32.xlu0 %v644, 64
        %v651 = vpop.permute.xlu0 %650
        %652 = vrot.lane.b32.xlu0 %v645, 64
        %v653 = vpop.permute.xlu0 %652
        %v659 = vsel %vm547, %v633, 0
        %661 = vmatprep.subr.mxu0 0.0
        %662 = vmatpush1.msra.mxu0 %v647
        %663 = vmatprep.subr.mxu0 0.0
        %664 = vmatpush1.msra.mxu0 %v649
        %665 = vmatprep.subr.mxu0 0.0
        %666 = vmatpush1.msra.mxu0 %v651
        %667 = vmatprep.subr.mxu0 0.0
        %668 = vmatpush1.msra.mxu0 %v653
        %669 = vmatprep.subr.mxu0 0.0
        %670 = vmatpush1.msra.mxu0 0.0
        %671 = vmatprep.subr.mxu0 0.0
        %672 = vmatpush1.msra.mxu0 0.0
        %673 = vmatprep.subr.mxu0 0.0
        %674 = vmatpush1.msra.mxu0 0.0
        %675 = vmatprep.subr.mxu0 0.0
        %676 = vmatpush1.msra.mxu0 0.0
        %677 = vmatprep.subr.mxu0 0.0
        %678 = vmatpush1.msra.mxu0 0.0
        %679 = vmatprep.subr.mxu0 0.0
        %680 = vmatpush1.msra.mxu0 0.0
        %681 = vmatprep.subr.mxu0 0.0
        %682 = vmatpush1.msra.mxu0 0.0
        %683 = vmatprep.subr.mxu0 0.0
        %684 = vmatpush1.msra.mxu0 0.0
        %685 = vmatprep.subr.mxu0 0.0
        %686 = vmatpush1.msra.mxu0 0.0
        %687 = vmatprep.subr.mxu0 0.0
        %688 = vmatpush1.msra.mxu0 0.0
        %689 = vmatprep.subr.mxu0 0.0
        %690 = vmatpush1.msra.mxu0 0.0
        %691 = vmatprep.subr.mxu0 0.0
        %692 = vmatpush1.msra.mxu0 0.0
        %693 = vmatprep.subr.mxu0 0.0
        %694 = vmatpush1.msra.mxu0 0.0
        %695 = vmatprep.subr.mxu0 0.0
        %696 = vmatpush1.msra.mxu0 0.0
        %697 = vmatprep.subr.mxu0 0.0
        %698 = vmatpush1.msra.mxu0 0.0
        %699 = vmatprep.subr.mxu0 0.0
        %700 = vmatpush1.msra.mxu0 0.0
        %701 = vmatprep.subr.mxu0 0.0
        %702 = vmatpush1.msra.mxu0 0.0
        %703 = vmatprep.subr.mxu0 0.0
        %704 = vmatpush1.msra.mxu0 0.0
        %705 = vmatprep.subr.mxu0 0.0
        %706 = vmatpush1.msra.mxu0 0.0
        %707 = vmatprep.subr.mxu0 0.0
        %708 = vmatpush1.msra.mxu0 0.0
        %709 = vmatprep.subr.mxu0 0.0
        %710 = vmatpush1.msra.mxu0 0.0
        %711 = vmatprep.subr.mxu0 0.0
        %712 = vmatpush1.msra.mxu0 0.0
        %713 = vmatprep.subr.mxu0 0.0
        %714 = vmatpush1.msra.mxu0 0.0
        %715 = vmatprep.subr.mxu0 0.0
        %716 = vmatpush1.msra.mxu0 0.0
        %717 = vmatprep.subr.mxu0 0.0
        %718 = vmatpush1.msra.mxu0 0.0
        %719 = vmatprep.subr.mxu0 0.0
        %720 = vmatpush1.msra.mxu0 0.0
        %721 = vmatprep.subr.mxu0 0.0
        %722 = vmatpush1.msra.mxu0 0.0
        %723 = vmatprep.subr.mxu0 0.0
        %724 = vmatpush1.msra.mxu0 0.0
        %725 = vmatprep.mubr.f32.mxu0 0.0
        %726 = vmatmul.mubr.f32.gmra.mrb[0].mxu0 %v659
        %v727 = vpop.f32.mrb[0].mxu0
        %v728 = vadd.f32 0.0, %v727
        %v729 = vpop.f32.mrb[0].mxu0
        %730 = vdwg.mxu0
        %v731 = vld [vmem:[#allocation8] sm:$0xff]
        %v732 = vld [vmem:[#allocation8 + $0x8] sm:$0xff]
        %v733 = vld [vmem:[#allocation8 + $0x10] sm:$0xff]
        %v734 = vld [vmem:[#allocation8 + $0x18] sm:$0xff]
        %735 = vmatprep.subr.mxu0 0.0
        %736 = vmatpush1.msra.mxu0 %v731
        %737 = vmatprep.subr.mxu0 0.0
        %738 = vmatpush1.msra.mxu0 %v732
        %739 = vmatprep.subr.mxu0 0.0
        %740 = vmatpush1.msra.mxu0 %v733
        %741 = vmatprep.subr.mxu0 0.0
        %742 = vmatpush1.msra.mxu0 %v734
        %743 = vmatprep.subr.mxu0 0.0
        %744 = vmatpush1.msra.mxu0 0.0
        %745 = vmatprep.subr.mxu0 0.0
        %746 = vmatpush1.msra.mxu0 0.0
        %747 = vmatprep.subr.mxu0 0.0
        %748 = vmatpush1.msra.mxu0 0.0
        %749 = vmatprep.subr.mxu0 0.0
        %750 = vmatpush1.msra.mxu0 0.0
        %751 = vmatprep.subr.mxu0 0.0
        %752 = vmatpush1.msra.mxu0 0.0
        %753 = vmatprep.subr.mxu0 0.0
        %754 = vmatpush1.msra.mxu0 0.0
        %755 = vmatprep.subr.mxu0 0.0
        %756 = vmatpush1.msra.mxu0 0.0
        %757 = vmatprep.subr.mxu0 0.0
        %758 = vmatpush1.msra.mxu0 0.0
        %759 = vmatprep.subr.mxu0 0.0
        %760 = vmatpush1.msra.mxu0 0.0
        %761 = vmatprep.subr.mxu0 0.0
        %762 = vmatpush1.msra.mxu0 0.0
        %763 = vmatprep.subr.mxu0 0.0
        %764 = vmatpush1.msra.mxu0 0.0
        %765 = vmatprep.subr.mxu0 0.0
        %766 = vmatpush1.msra.mxu0 0.0
        %767 = vmatprep.subr.mxu0 0.0
        %768 = vmatpush1.msra.mxu0 0.0
        %769 = vmatprep.subr.mxu0 0.0
        %770 = vmatpush1.msra.mxu0 0.0
        %771 = vmatprep.subr.mxu0 0.0
        %772 = vmatpush1.msra.mxu0 0.0
        %773 = vmatprep.subr.mxu0 0.0
        %774 = vmatpush1.msra.mxu0 0.0
        %775 = vmatprep.subr.mxu0 0.0
        %776 = vmatpush1.msra.mxu0 0.0
        %777 = vmatprep.subr.mxu0 0.0
        %778 = vmatpush1.msra.mxu0 0.0
        %779 = vmatprep.subr.mxu0 0.0
        %780 = vmatpush1.msra.mxu0 0.0
        %781 = vmatprep.subr.mxu0 0.0
        %782 = vmatpush1.msra.mxu0 0.0
        %783 = vmatprep.subr.mxu0 0.0
        %784 = vmatpush1.msra.mxu0 0.0
        %785 = vmatprep.subr.mxu0 0.0
        %786 = vmatpush1.msra.mxu0 0.0
        %787 = vmatprep.subr.mxu0 0.0
        %788 = vmatpush1.msra.mxu0 0.0
        %789 = vmatprep.subr.mxu0 0.0
        %790 = vmatpush1.msra.mxu0 0.0
        %791 = vmatprep.subr.mxu0 0.0
        %792 = vmatpush1.msra.mxu0 0.0
        %793 = vmatprep.subr.mxu0 0.0
        %794 = vmatpush1.msra.mxu0 0.0
        %795 = vmatprep.subr.mxu0 0.0
        %796 = vmatpush1.msra.mxu0 0.0
        %797 = vmatprep.subr.mxu0 0.0
        %798 = vmatpush1.msra.mxu0 0.0
        %799 = vmatprep.mubr.f32.mxu0 0.0
        %800 = vmatmul.mubr.f32.gmra.mrb[0].mxu0 %v659
        %v801 = vpop.f32.mrb[0].mxu0
        %v802 = vadd.f32 0.0, %v801
        %v803 = vpop.f32.mrb[0].mxu0
        %804 = vdwg.mxu0
        %v805 = vmax.f32 %v802, 1e-30
        %v806 = vrcp.pop %v805
        %v807 = vmul.f32 %v728, %v806
        %v808 = vld [vmem:[#allocation7] sm:$0xff]
        %v809 = vld [vmem:[#allocation7 + $0x8] sm:$0xff]
        %v810 = vld [vmem:[#allocation7 + $0x10] sm:$0xff]
        %v811 = vld [vmem:[#allocation7 + $0x18] sm:$0xff]
        %v813 = vsel %vm547, %v807, 0
        %815 = vmatprep.subr.mxu0 0.0
        %816 = vmatpush1.msra.mxu0 %v808
        %817 = vmatprep.subr.mxu0 0.0
        %818 = vmatpush1.msra.mxu0 %v809
        %819 = vmatprep.subr.mxu0 0.0
        %820 = vmatpush1.msra.mxu0 %v810
        %821 = vmatprep.subr.mxu0 0.0
        %822 = vmatpush1.msra.mxu0 %v811
        %823 = vmatprep.subr.mxu0 0.0
        %824 = vmatpush1.msra.mxu0 0.0
        %825 = vmatprep.subr.mxu0 0.0
        %826 = vmatpush1.msra.mxu0 0.0
        %827 = vmatprep.subr.mxu0 0.0
        %828 = vmatpush1.msra.mxu0 0.0
        %829 = vmatprep.subr.mxu0 0.0
        %830 = vmatpush1.msra.mxu0 0.0
        %831 = vmatprep.subr.mxu0 0.0
        %832 = vmatpush1.msra.mxu0 0.0
        %833 = vmatprep.subr.mxu0 0.0
        %834 = vmatpush1.msra.mxu0 0.0
        %835 = vmatprep.subr.mxu0 0.0
        %836 = vmatpush1.msra.mxu0 0.0
        %837 = vmatprep.subr.mxu0 0.0
        %838 = vmatpush1.msra.mxu0 0.0
        %839 = vmatprep.subr.mxu0 0.0
        %840 = vmatpush1.msra.mxu0 0.0
        %841 = vmatprep.subr.mxu0 0.0
        %842 = vmatpush1.msra.mxu0 0.0
        %843 = vmatprep.subr.mxu0 0.0
        %844 = vmatpush1.msra.mxu0 0.0
        %845 = vmatprep.subr.mxu0 0.0
        %846 = vmatpush1.msra.mxu0 0.0
        %847 = vmatprep.subr.mxu0 0.0
        %848 = vmatpush1.msra.mxu0 0.0
        %849 = vmatprep.subr.mxu0 0.0
        %850 = vmatpush1.msra.mxu0 0.0
        %851 = vmatprep.subr.mxu0 0.0
        %852 = vmatpush1.msra.mxu0 0.0
        %853 = vmatprep.subr.mxu0 0.0
        %854 = vmatpush1.msra.mxu0 0.0
        %855 = vmatprep.subr.mxu0 0.0
        %856 = vmatpush1.msra.mxu0 0.0
        %857 = vmatprep.subr.mxu0 0.0
        %858 = vmatpush1.msra.mxu0 0.0
        %859 = vmatprep.subr.mxu0 0.0
        %860 = vmatpush1.msra.mxu0 0.0
        %861 = vmatprep.subr.mxu0 0.0
        %862 = vmatpush1.msra.mxu0 0.0
        %863 = vmatprep.subr.mxu0 0.0
        %864 = vmatpush1.msra.mxu0 0.0
        %865 = vmatprep.subr.mxu0 0.0
        %866 = vmatpush1.msra.mxu0 0.0
        %867 = vmatprep.subr.mxu0 0.0
        %868 = vmatpush1.msra.mxu0 0.0
        %869 = vmatprep.subr.mxu0 0.0
        %870 = vmatpush1.msra.mxu0 0.0
        %871 = vmatprep.subr.mxu0 0.0
        %872 = vmatpush1.msra.mxu0 0.0
        %873 = vmatprep.subr.mxu0 0.0
        %874 = vmatpush1.msra.mxu0 0.0
        %875 = vmatprep.subr.mxu0 0.0
        %876 = vmatpush1.msra.mxu0 0.0
        %877 = vmatprep.subr.mxu0 0.0
        %878 = vmatpush1.msra.mxu0 0.0
        %879 = vmatprep.mubr.f32.mxu0 0.0
        %880 = vmatmul.mubr.f32.gmra.mrb[0].mxu0 %v813
        %v881 = vpop.f32.mrb[0].mxu0
        %v882 = vadd.f32 0.0, %v881
        %v883 = vpop.f32.mrb[0].mxu0
        %884 = vdwg.mxu0
        %885 = vst [vmem:[%s321] sm:$0xff] %v882
        %s886 = sand.u32 %s169, 1
        %s887 = scalar_lea.sflag [#allocation4], %s886
        %s888 = sand.u32 %s169, 1
        %s889 = smul.addr %s888, 8
        %s890 = scalar_lea.vmem [#allocation10], %s889
        // Predicated region
        $region61: #{tpu_custom_call.1} parent=43 // pred_check
          %p891 = pneg %p179
        $region62: #{tpu_custom_call.1} parent=43 // pred_check_branch
          %893 = sbr.rel (%p891) target = $region64
        $region63: #{tpu_custom_call.1} parent=43 // pred_region
          %s895 = ssub.s32 128, 128
          %896 = vsyncadd %s887, %s895
          %s897 = smul.addr %s25, 128
          %s898 = scalar_lea.hbm %s6, %s897
          %s900 = sshll.u32 %s890, 4
          %s901 = int_to_ptr.vmem [resolvable:$true] %s900
          %903 = dma.vmem_to_hbm [thread:$0]  %s901, 128, %s898, %s887
        $region64: #{tpu_custom_call.1} parent=43 // pred_fallthru
          _
      $region44: #{tpu_custom_call.1} parent=5 // pred_fallthru
        _
      %p904 = scmp.le.s32.totalorder 2, %s20
      // Predicated region
      $region65: #{tpu_custom_call.1} parent=5 // pred_check
        %p905 = pneg %p904
      $region66: #{tpu_custom_call.1} parent=5 // pred_check_branch
        %907 = sbr.rel (%p905) target = $region68
      $region67: #{tpu_custom_call.1} parent=5 // pred_region
        %s908 = ssub.s32 %s20, 2
        // Predicated region
        $region69: #{tpu_custom_call.1} parent=67 // pred_check
          %p909 = pneg %p185
        $region70: #{tpu_custom_call.1} parent=67 // pred_check_branch
          %911 = sbr.rel (%p909) target = $region72
        $region71: #{tpu_custom_call.1} parent=67 // pred_region
          %s912 = sand.u32 %s170, 1
          %s913 = scalar_lea.sflag [#allocation4], %s912
          %s914 = sand.u32 %s170, 1
          %s915 = smul.addr %s914, 8
          %s916 = scalar_lea.vmem [#allocation10], %s915
          %917 = dma.done %s913, 128
        $region72: #{tpu_custom_call.1} parent=67 // pred_fallthru
          _
      $region68: #{tpu_custom_call.1} parent=5 // pred_fallthru
        _
    $region6: #{tpu_custom_call.1} parent=1 // loop_footer
      %s24 = sadd.s32 1, %s20
    $region7: #{tpu_custom_call.1} parent=1 // loop_footer_branch
      %19 = sbr.rel target = $region3
    $region8: #{tpu_custom_call.1} parent=1 // loop_exit
      _
    %918 = vsyncpa [#allocation3], 1
    %s919 = scalar_lea.sflag [#allocation3], 1
    %920 = vsyncpa %s919, 1
    %921 = vsyncpa [#allocation6], 1
    %922 = vsyncpa [#allocation9], 1
    %923 = vsyncpa [#allocation4], 1
    %s924 = scalar_lea.sflag [#allocation4], 1
    %925 = vsyncpa %s924, 1

</llo_original>
